<compile_context>
chip_gen: v6e
topology: v6e:2x2x1
jax: 0.10.0
libtpu: 0.0.40
codegen_flags: <defaults>
</compile_context>

<pallas_src>
import functools
import math

import jax
import jax.numpy as jnp
from jax.experimental import pallas as pl
from jax.experimental.pallas import tpu as pltpu


def _round_up(v, m):
    return ((v + m - 1) // m) * m


def _focal_term(one_minus_pt, gamma):
    """(1-pt)**gamma; integer gamma via repeated multiply (no extra EUP log/exp)."""
    g = float(gamma)
    if g == 0.0:
        return jnp.ones_like(one_minus_pt)
    if g.is_integer() and 0.0 < g <= 8.0:
        out = one_minus_pt
        for _ in range(int(g) - 1):
            out = out * one_minus_pt
        return out
    return one_minus_pt ** g


# ---------------------------------------------------------------------------
# (G, C, M) kernel: classes on sublanes, items on lanes (native NCHW layout).
# ---------------------------------------------------------------------------
def _focal_loss_kernel_gcm(x_ref, y_ref, *refs, gamma, ignore_index, n_items,
                           n_groups, tile_cols, g_tile, has_alpha):
    if has_alpha:
        alpha_ref, loss_ref, cnt_ref = refs
    else:
        loss_ref, cnt_ref = refs

    gi = pl.program_id(0)
    j = pl.program_id(1)

    x = x_ref[...].astype(jnp.float32)            # (g_tile, C, T)
    y = y_ref[...].astype(jnp.int32)              # (g_tile, 1, T)

    # numerically stable softmax statistics over the class (sublane) axis
    m = jnp.max(x, axis=1, keepdims=True)         # (g, 1, T)
    z = x - m
    ez = jnp.exp(z)                               # (g, C, T) -- reused below for pt
    sumexp = jnp.sum(ez, axis=1, keepdims=True)   # (g, 1, T)

    # gather the label-class entries via one-hot select + sublane reduce
    cls = jax.lax.broadcasted_iota(jnp.int32, x.shape, 1)
    onehot = cls == y                             # (g, C, T)
    z_y = jnp.sum(jnp.where(onehot, z, 0.0), axis=1, keepdims=True)
    ez_y = jnp.sum(jnp.where(onehot, ez, 0.0), axis=1, keepdims=True)

    log_pt = z_y - jnp.log(sumexp)                                  # (g, 1, T)
    pt = ez_y * pl.reciprocal(sumexp, approx=True)                  # reuse exp(z)

    valid = y != ignore_index
    if n_items % tile_cols != 0:
        col = jax.lax.broadcasted_iota(jnp.int32, y.shape, 2) + j * tile_cols
        valid = valid & (col < n_items)
    if n_groups % g_tile != 0:
        grp = jax.lax.broadcasted_iota(jnp.int32, y.shape, 0) + gi * g_tile
        valid = valid & (grp < n_groups)

    if has_alpha:
        alpha = alpha_ref[...].astype(jnp.float32)[None]            # (1, C, 1)
        w_y = jnp.sum(jnp.where(onehot, alpha, 0.0), axis=1, keepdims=True)
        ce = -w_y * log_pt
    else:
        ce = -log_pt

    one_minus_pt = jnp.maximum(1.0 - pt, 0.0)     # clamp: approx math may give pt>1
    focal = _focal_term(one_minus_pt, gamma)

    loss = jnp.where(valid, focal * ce, 0.0)      # (g, 1, T)
    cnt = valid.astype(jnp.float32)               # (g, 1, T)

    # fold the T lanes down to a 128-lane partial (static aligned slices, pure VPU) so
    # each (gi, j) writes its own small lane-dense output block -> both axes parallel.
    n_chunks = tile_cols // 128
    loss_p = loss[:, :, 0:128]
    cnt_p = cnt[:, :, 0:128]
    for k in range(1, n_chunks):
        loss_p = loss_p + loss[:, :, k * 128:(k + 1) * 128]
        cnt_p = cnt_p + cnt[:, :, k * 128:(k + 1) * 128]
    loss_ref[...] = loss_p                        # (g_tile, 1, 128)
    cnt_ref[...] = cnt_p


# ---------------------------------------------------------------------------
# (N, C) kernel: classes on lanes, rows on sublanes (native 2-D layout; no transpose).
# ---------------------------------------------------------------------------
def _focal_loss_kernel_nc(x_ref, y_ref, *refs, gamma, ignore_index, n_rows,
                          tile_rows, has_alpha):
    if has_alpha:
        alpha_ref, loss_ref, cnt_ref = refs
    else:
        loss_ref, cnt_ref = refs

    i = pl.program_id(0)

    x = x_ref[...].astype(jnp.float32)            # (R, C)
    y = y_ref[...].astype(jnp.int32)              # (R, 1)

    m = jnp.max(x, axis=1, keepdims=True)
    z = x - m
    ez = jnp.exp(z)
    sumexp = jnp.sum(ez, axis=1, keepdims=True)

    cls = jax.lax.broadcasted_iota(jnp.int32, x.shape, 1)
    onehot = cls == y
    z_y = jnp.sum(jnp.where(onehot, z, 0.0), axis=1, keepdims=True)
    ez_y = jnp.sum(jnp.where(onehot, ez, 0.0), axis=1, keepdims=True)

    log_pt = z_y - jnp.log(sumexp)
    pt = ez_y * pl.reciprocal(sumexp, approx=True)

    valid = y != ignore_index
    if n_rows % tile_rows != 0:
        row = jax.lax.broadcasted_iota(jnp.int32, y.shape, 0) + i * tile_rows
        valid = valid & (row < n_rows)

    if has_alpha:
        alpha = alpha_ref[...].astype(jnp.float32)                  # (1, C)
        w_y = jnp.sum(jnp.where(onehot, alpha, 0.0), axis=1, keepdims=True)
        ce = -w_y * log_pt
    else:
        ce = -log_pt

    one_minus_pt = jnp.maximum(1.0 - pt, 0.0)
    focal = _focal_term(one_minus_pt, gamma)

    loss_ref[...] = jnp.where(valid, focal * ce, 0.0)               # (R, 1)
    cnt_ref[...] = valid.astype(jnp.float32)


# ---------------------------------------------------------------------------
# Tiling / VMEM policy
# ---------------------------------------------------------------------------
def _vmem_policy():
    """Generation-aware budget: 64 MiB physical on v7x vs 128 MiB on v5e/v6e."""
    cap = None
    try:
        cap = getattr(pltpu.get_tpu_info(), "vmem_capacity_bytes", None)
    except Exception:
        cap = None
    if not cap:
        cap = 64 * 1024 * 1024                    # conservative (v7x) fallback
    vmem_limit = min(cap // 2, 32 * 1024 * 1024)  # scoped limit well under physical
    budget = vmem_limit // 2                      # working-set target for tile sizing
    return budget, vmem_limit


def _pick_tiles_gcm(g, c, s, x_itemsize, budget, tile_cols=None):
    """(g_tile, tile_cols) for the (G, C, M) kernel.

    Per-column accounting includes double-buffered blocks (label block sublane-padded
    to 8 rows) and f32 temporaries; lane tile capped at 8192 (throughput saturates by
    ~1-2K columns, bigger tiles only bloat the f32 (C,T) intermediates).
    """
    per_col = (2 * c * x_itemsize   # double-buffered logits block
               + 2 * 8 * 4          # double-buffered labels block (sublane-padded)
               + 12 * c * 4         # f32 (C,T) temporaries (cast, z, exp, iota, selects)
               + 16 * 4)            # (1,T)-shaped f32 temporaries
    s_pad = _round_up(s, 128)
    if tile_cols is None:
        max_cols = max(128, min(8192, (budget // per_col) // 128 * 128))
        tile_cols = min(s_pad, max_cols)
    else:
        tile_cols = max(128, (int(tile_cols) // 128) * 128)
        tile_cols = min(tile_cols, s_pad)
    n_j = pl.cdiv(s, tile_cols)
    if n_j == 1:
        # Small spatial extent: pack several groups per grid step to amortize the
        # ~0.35 us per-step overhead (only when the item axis fits in one tile).
        g_tile = max(1, min(g, budget // (per_col * tile_cols)))
    else:
        g_tile = 1
    return int(g_tile), int(tile_cols)


def _pick_tile_rows_nc(n, c, itemsize, budget):
    per_row = (2 * c * itemsize     # double-buffered logits block
               + 2 * 128 * 4        # labels block, lane-padded to 128, double-buffered
               + 4 * 128 * 4        # two f32 per-row output blocks, double-buffered
               + 12 * c * 4 + 64)   # f32 temporaries
    rows = (budget // per_row) // 32 * 32
    rows = max(32, min(512, rows))
    return int(min(rows, _round_up(n, 32)))


# ---------------------------------------------------------------------------
# Public wrapper
# ---------------------------------------------------------------------------
def focal_loss(x, y, alpha=None, gamma: float = 0.0, reduction: str = "mean",
               ignore_index: int = -100, tile_cols=None):
    """Pallas TPU focal loss (forward).

    x: (B, C) or (B, C, d1, ..., dK) float logits (classes in dim 1)
    y: (B,)  or (B, d1, ..., dK) integer class labels
    """
    if reduction not in ("mean", "sum"):
        # TODO(synk): reduction='none' not implemented.
        raise ValueError("Only 'mean' and 'sum' reductions are supported.")

    budget, vmem_limit = _vmem_policy()
    has_alpha = alpha is not None

    if x.ndim > 2:
        b, c = x.shape[0], x.shape[1]
        s = math.prod(x.shape[2:])
        x3 = x.reshape(b, c, s)                    # free reshape of native NCHW
        y3 = y.reshape(b, 1, s)                    # no dtype cast pass; kernel casts

        g_tile, tc = _pick_tiles_gcm(b, c, s, x.dtype.itemsize, budget, tile_cols)
        n_gi = pl.cdiv(b, g_tile)
        n_j = pl.cdiv(s, tc)

        kernel = functools.partial(
            _focal_loss_kernel_gcm, gamma=float(gamma), ignore_index=int(ignore_index),
            n_items=int(s), n_groups=int(b), tile_cols=int(tc), g_tile=int(g_tile),
            has_alpha=has_alpha)

        in_specs = [pl.BlockSpec((g_tile, c, tc), lambda gi, j: (gi, 0, j)),
                    pl.BlockSpec((g_tile, 1, tc), lambda gi, j: (gi, 0, j))]
        args = [x3, y3]
        if has_alpha:
            in_specs.append(pl.BlockSpec((c, 1), lambda gi, j: (0, 0)))
            args.append(jnp.asarray(alpha, jnp.float32).reshape(c, 1))

        loss_part, cnt_part = pl.pallas_call(
            kernel,
            grid=(n_gi, n_j),
            in_specs=in_specs,
            out_specs=[pl.BlockSpec((g_tile, 1, 128), lambda gi, j: (gi, 0, j)),
                       pl.BlockSpec((g_tile, 1, 128), lambda gi, j: (gi, 0, j))],
            out_shape=(jax.ShapeDtypeStruct((b, 1, n_j * 128), jnp.float32),
                       jax.ShapeDtypeStruct((b, 1, n_j * 128), jnp.float32)),
            compiler_params=pltpu.CompilerParams(
                dimension_semantics=("parallel", "parallel"),
                vmem_limit_bytes=vmem_limit),
        )(*args)

    elif x.ndim == 2:
        n, c = x.shape
        y2 = y.reshape(n, 1)                       # free; no transpose of x needed

        tile_rows = _pick_tile_rows_nc(n, c, x.dtype.itemsize, budget)
        n_i = pl.cdiv(n, tile_rows)

        kernel = functools.partial(
            _focal_loss_kernel_nc, gamma=float(gamma), ignore_index=int(ignore_index),
            n_rows=int(n), tile_rows=int(tile_rows), has_alpha=has_alpha)

        in_specs = [pl.BlockSpec((tile_rows, c), lambda i: (i, 0)),
                    pl.BlockSpec((tile_rows, 1), lambda i: (i, 0))]
        args = [x, y2]
        if has_alpha:
            in_specs.append(pl.BlockSpec((1, c), lambda i: (0, 0)))
            args.append(jnp.asarray(alpha, jnp.float32).reshape(1, c))

        loss_part, cnt_part = pl.pallas_call(
            kernel,
            grid=(n_i,),
            in_specs=in_specs,
            out_specs=[pl.BlockSpec((tile_rows, 1), lambda i: (i, 0)),
                       pl.BlockSpec((tile_rows, 1), lambda i: (i, 0))],
            out_shape=(jax.ShapeDtypeStruct((n, 1), jnp.float32),
                       jax.ShapeDtypeStruct((n, 1), jnp.float32)),
            compiler_params=pltpu.CompilerParams(
                dimension_semantics=("parallel",),
                vmem_limit_bytes=vmem_limit),
        )(*args)
    else:
        raise ValueError("x must be (B, C) or (B, C, d1, ..., dK)")

    loss_sum = jnp.sum(loss_part)
    valid_cnt = jnp.sum(cnt_part)

    if reduction == "mean":
        # PyTorch filters ignored rows first, then .mean(): denominator is valid count;
        # zero valid items -> 0.0 (matches the reference's early return).
        return jnp.where(valid_cnt > 0, loss_sum / jnp.maximum(valid_cnt, 1.0), 0.0)
    return loss_sum


# ---------------------------------------------------------------------------
# Pure-JAX reference mirroring the PyTorch forward.
# ---------------------------------------------------------------------------
def _focal_loss_ref(x, y, alpha, gamma, ignore_index, reduction="mean"):
    if x.ndim > 2:
        c = x.shape[1]
        perm = (0,) + tuple(range(2, x.ndim)) + (1,)
        x = jnp.transpose(x, perm).reshape(-1, c)
        y = y.reshape(-1)
    valid = y != ignore_index
    y_safe = jnp.where(valid, y, 0)
    log_p = jax.nn.log_softmax(x.astype(jnp.float32), axis=-1)
    log_pt = jnp.take_along_axis(log_p, y_safe[:, None], axis=-1)[:, 0]
    w = alpha[y_safe]
    ce = -w * log_pt
    loss = (1.0 - jnp.exp(log_pt)) ** gamma * ce
    loss = jnp.where(valid, loss, 0.0)
    if reduction == "sum":
        return jnp.sum(loss)
    cnt = jnp.sum(valid)
    return jnp.where(cnt > 0, jnp.sum(loss) / jnp.maximum(cnt, 1), 0.0)


if __name__ == "__main__":
    key = jax.random.PRNGKey(0)
    kx, ky, kx2, ky2, kx3, ky3 = jax.random.split(key, 6)

    # --- main case: NCHW f32, per-class alpha, mean reduction, some ignored labels ---
    B, C, H, W = 2, 4, 16, 16
    gamma = 2.0
    ignore_index = -100

    x = jax.random.normal(kx, (B, C, H, W), dtype=jnp.float32)
    y = jax.random.randint(ky, (B, H, W), 0, C, dtype=jnp.int32)
    y = y.at[0, 0, :4].set(ignore_index)
    alpha = jnp.linspace(0.5, 1.5, C, dtype=jnp.float32)

    out = focal_loss(x, y, alpha=alpha, gamma=gamma, reduction="mean",
                     ignore_index=ignore_index)
    out = jax.block_until_ready(out)
    ref = _focal_loss_ref(x, y, alpha, gamma, ignore_index)
    assert jnp.allclose(out, ref, rtol=1e-3, atol=1e-5), (out, ref)

    # --- bf16 logits, sum reduction, ragged last tile (forces in-kernel tail mask) ---
    B2, C2, H2, W2 = 1, 4, 20, 20        # S = 400; tile_cols=128 -> partial last tile
    xb = jax.random.normal(kx2, (B2, C2, H2, W2), dtype=jnp.bfloat16)
    yb = jax.random.randint(ky2, (B2, H2, W2), 0, C2, dtype=jnp.int32)
    out2 = focal_loss(xb, yb, gamma=gamma, reduction="sum",
                      ignore_index=ignore_index, tile_cols=128)
    out2 = jax.block_until_ready(out2)
    ref2 = _focal_loss_ref(xb, yb, jnp.ones((C2,), jnp.float32), gamma,
                           ignore_index, reduction="sum")
    assert jnp.allclose(out2, ref2, rtol=1e-3, atol=1e-2), (out2, ref2)

    # --- 2-D classification input (no transpose path), non-integer gamma (pow path) ---
    N3, C3 = 96, 10
    x2d = jax.random.normal(kx3, (N3, C3), dtype=jnp.float32)
    y2d = jax.random.randint(ky3, (N3,), 0, C3, dtype=jnp.int32)
    y2d = y2d.at[:5].set(ignore_index)
    out3 = focal_loss(x2d, y2d, gamma=1.5, reduction="mean", ignore_index=ignore_index)
    out3 = jax.block_until_ready(out3)
    ref3 = _focal_loss_ref(x2d, y2d, jnp.ones((C3,), jnp.float32), 1.5, ignore_index)
    assert jnp.allclose(out3, ref3, rtol=1e-3, atol=1e-5), (out3, ref3)

    print("KERNEL_OK")
</pallas_src>

<mosaic_0001>
module attributes {stable_mosaic.version = 11 : i64} {
  func.func @_focal_loss_kernel_gcm(%arg0: i32, %arg1: i32, %arg2: memref<2x4x256xf32, #tpu.memory_space<vmem>>, %arg3: memref<2x1x256xi32, #tpu.memory_space<vmem>>, %arg4: memref<4x1xf32, #tpu.memory_space<vmem>>, %arg5: memref<2x1x128xf32, #tpu.memory_space<vmem>>, %arg6: memref<2x1x128xf32, #tpu.memory_space<vmem>>) attributes {dimension_semantics = [#tpu.dimension_semantics<parallel>, #tpu.dimension_semantics<parallel>], iteration_bounds = array<i64: 1, 1>, scalar_prefetch = 0 : i64, scratch_operands = 0 : i64, tpu.core_type = #tpu.core_type<tc>, window_params = [{transform_indices = @transform_0, window_bounds = array<i64: 2, 4, 256>}, {transform_indices = @transform_1, window_bounds = array<i64: 2, 1, 256>}, {pipeline_mode = #tpu.pipeline_mode<synchronous>, transform_indices = @transform_2, window_bounds = array<i64: 4, 1>}, {transform_indices = @transform_3, window_bounds = array<i64: 2, 1, 128>}, {transform_indices = @transform_4, window_bounds = array<i64: 2, 1, 128>}]} {
    %c0 = arith.constant 0 : index
    %c0_0 = arith.constant 0 : index
    %c0_1 = arith.constant 0 : index
    %0 = vector.load %arg2[%c0, %c0_0, %c0_1] : memref<2x4x256xf32, #tpu.memory_space<vmem>>, vector<2x4x256xf32>
    %c0_2 = arith.constant 0 : index
    %c0_3 = arith.constant 0 : index
    %c0_4 = arith.constant 0 : index
    %1 = vector.load %arg3[%c0_2, %c0_3, %c0_4] : memref<2x1x256xi32, #tpu.memory_space<vmem>>, vector<2x1x256xi32>
    %cst = arith.constant dense<0xFF800000> : vector<2x256xf32>
    %2 = vector.multi_reduction <maximumf>, %0, %cst [1] : vector<2x4x256xf32> to vector<2x256xf32>
    %3 = vector.shape_cast %2 : vector<2x256xf32> to vector<2x1x256xf32>
    %4 = vector.broadcast %3 : vector<2x1x256xf32> to vector<2x4x256xf32>
    %5 = arith.subf %0, %4 : vector<2x4x256xf32>
    %6 = math.exp %5 : vector<2x4x256xf32>
    %cst_5 = arith.constant dense<0.000000e+00> : vector<2x256xf32>
    %7 = vector.multi_reduction <add>, %6, %cst_5 [1] : vector<2x4x256xf32> to vector<2x256xf32>
    %8 = vector.shape_cast %7 : vector<2x256xf32> to vector<2x1x256xf32>
    %9 = tpu.iota {dimensions = array<i32: 1>} : vector<2x4x256xi32>
    %10 = vector.broadcast %1 : vector<2x1x256xi32> to vector<2x4x256xi32>
    %11 = arith.cmpi eq, %9, %10 : vector<2x4x256xi32>
    %cst_6 = arith.constant 0.000000e+00 : f32
    %12 = vector.broadcast %cst_6 : f32 to vector<2x4x256xf32>
    %13 = arith.select %11, %5, %12 : vector<2x4x256xi1>, vector<2x4x256xf32>
    %cst_7 = arith.constant dense<0.000000e+00> : vector<2x256xf32>
    %14 = vector.multi_reduction <add>, %13, %cst_7 [1] : vector<2x4x256xf32> to vector<2x256xf32>
    %15 = vector.shape_cast %14 : vector<2x256xf32> to vector<2x1x256xf32>
    %cst_8 = arith.constant 0.000000e+00 : f32
    %16 = vector.broadcast %cst_8 : f32 to vector<2x4x256xf32>
    %17 = arith.select %11, %6, %16 : vector<2x4x256xi1>, vector<2x4x256xf32>
    %cst_9 = arith.constant dense<0.000000e+00> : vector<2x256xf32>
    %18 = vector.multi_reduction <add>, %17, %cst_9 [1] : vector<2x4x256xf32> to vector<2x256xf32>
    %19 = vector.shape_cast %18 : vector<2x256xf32> to vector<2x1x256xf32>
    %20 = math.log %8 : vector<2x1x256xf32>
    %21 = arith.subf %15, %20 : vector<2x1x256xf32>
    %22 = tpu.reciprocal %8 {approx = true} : vector<2x1x256xf32> -> vector<2x1x256xf32>
    %23 = arith.mulf %19, %22 : vector<2x1x256xf32>
    %c-100_i32 = arith.constant -100 : i32
    %24 = vector.broadcast %c-100_i32 : i32 to vector<2x1x256xi32>
    %25 = arith.cmpi ne, %1, %24 : vector<2x1x256xi32>
    %c0_10 = arith.constant 0 : index
    %c0_11 = arith.constant 0 : index
    %26 = vector.load %arg4[%c0_10, %c0_11] : memref<4x1xf32, #tpu.memory_space<vmem>>, vector<4x1xf32>
    %27 = vector.shape_cast %26 : vector<4x1xf32> to vector<1x4x1xf32>
    %cst_12 = arith.constant 0.000000e+00 : f32
    %28 = vector.shape_cast %27 : vector<1x4x1xf32> to vector<1x4x1xf32>
    %29 = vector.broadcast %28 : vector<1x4x1xf32> to vector<2x4x256xf32>
    %30 = vector.broadcast %cst_12 : f32 to vector<2x4x256xf32>
    %31 = arith.select %11, %29, %30 : vector<2x4x256xi1>, vector<2x4x256xf32>
    %cst_13 = arith.constant dense<0.000000e+00> : vector<2x256xf32>
    %32 = vector.multi_reduction <add>, %31, %cst_13 [1] : vector<2x4x256xf32> to vector<2x256xf32>
    %33 = vector.shape_cast %32 : vector<2x256xf32> to vector<2x1x256xf32>
    %cst_14 = arith.constant 0.000000e+00 : f32
    %34 = vector.broadcast %cst_14 : f32 to vector<2x1x256xf32>
    %35 = arith.subf %34, %33 : vector<2x1x256xf32>
    %36 = arith.mulf %35, %21 : vector<2x1x256xf32>
    %cst_15 = arith.constant 1.000000e+00 : f32
    %37 = vector.broadcast %cst_15 : f32 to vector<2x1x256xf32>
    %38 = arith.subf %37, %23 : vector<2x1x256xf32>
    %cst_16 = arith.constant 0.000000e+00 : f32
    %39 = vector.broadcast %cst_16 : f32 to vector<2x1x256xf32>
    %40 = arith.maximumf %38, %39 : vector<2x1x256xf32>
    %41 = arith.mulf %40, %40 : vector<2x1x256xf32>
    %42 = arith.mulf %41, %36 : vector<2x1x256xf32>
    %cst_17 = arith.constant 0.000000e+00 : f32
    %43 = vector.broadcast %cst_17 : f32 to vector<2x1x256xf32>
    %44 = arith.select %25, %42, %43 : vector<2x1x256xi1>, vector<2x1x256xf32>
    %45 = arith.extui %25 : vector<2x1x256xi1> to vector<2x1x256xi32>
    %46 = arith.sitofp %45 : vector<2x1x256xi32> to vector<2x1x256xf32>
    %47 = vector.extract_strided_slice %44 {offsets = [0, 0, 0], sizes = [2, 1, 128], strides = [1, 1, 1]} : vector<2x1x256xf32> to vector<2x1x128xf32>
    %48 = vector.extract_strided_slice %46 {offsets = [0, 0, 0], sizes = [2, 1, 128], strides = [1, 1, 1]} : vector<2x1x256xf32> to vector<2x1x128xf32>
    %49 = vector.extract_strided_slice %44 {offsets = [0, 0, 128], sizes = [2, 1, 128], strides = [1, 1, 1]} : vector<2x1x256xf32> to vector<2x1x128xf32>
    %50 = arith.addf %47, %49 : vector<2x1x128xf32>
    %51 = vector.extract_strided_slice %46 {offsets = [0, 0, 128], sizes = [2, 1, 128], strides = [1, 1, 1]} : vector<2x1x256xf32> to vector<2x1x128xf32>
    %52 = arith.addf %48, %51 : vector<2x1x128xf32>
    %c0_18 = arith.constant 0 : index
    %c0_19 = arith.constant 0 : index
    %c0_20 = arith.constant 0 : index
    %53 = vector.load %arg5[%c0_18, %c0_19, %c0_20] : memref<2x1x128xf32, #tpu.memory_space<vmem>>, vector<2x1x128xf32>
    tpu.vector_store %arg5[%c0_18, %c0_19, %c0_20], %50 {strides = array<i32>} : memref<2x1x128xf32, #tpu.memory_space<vmem>>, vector<2x1x128xf32>,
    %c0_21 = arith.constant 0 : index
    %c0_22 = arith.constant 0 : index
    %c0_23 = arith.constant 0 : index
    %54 = vector.load %arg6[%c0_21, %c0_22, %c0_23] : memref<2x1x128xf32, #tpu.memory_space<vmem>>, vector<2x1x128xf32>
    tpu.vector_store %arg6[%c0_21, %c0_22, %c0_23], %52 {strides = array<i32>} : memref<2x1x128xf32, #tpu.memory_space<vmem>>, vector<2x1x128xf32>,
    return
  }
  func.func @transform_0(%arg0: i32, %arg1: i32) -> (i32, i32, i32) {
    %c0_i32 = arith.constant 0 : i32
    %c0_i32_0 = arith.constant 0 : i32
    return %arg0, %c0_i32, %arg1 : i32, i32, i32
  }
  func.func @transform_1(%arg0: i32, %arg1: i32) -> (i32, i32, i32) {
    %c0_i32 = arith.constant 0 : i32
    %c0_i32_0 = arith.constant 0 : i32
    return %arg0, %c0_i32, %arg1 : i32, i32, i32
  }
  func.func @transform_2(%arg0: i32, %arg1: i32) -> (i32, i32) {
    %c0_i32 = arith.constant 0 : i32
    %c0_i32_0 = arith.constant 0 : i32
    %c0_i32_1 = arith.constant 0 : i32
    return %c0_i32, %c0_i32_0 : i32, i32
  }
  func.func @transform_3(%arg0: i32, %arg1: i32) -> (i32, i32, i32) {
    %c0_i32 = arith.constant 0 : i32
    %c0_i32_0 = arith.constant 0 : i32
    return %arg0, %c0_i32, %arg1 : i32, i32, i32
  }
  func.func @transform_4(%arg0: i32, %arg1: i32) -> (i32, i32, i32) {
    %c0_i32 = arith.constant 0 : i32
    %c0_i32_0 = arith.constant 0 : i32
    return %arg0, %c0_i32, %arg1 : i32, i32, i32
  }
}

</mosaic_0001>

<llo_original>
// kernel: tpu_custom_call.1
$region0: #{tpu_custom_call.1}
  #allocation0 [shape = 'u32[]', space=smem, size = 0x4, offset = 0x4, fixed_abs, tag = 'smem constant byte address 0x4 - core index']
  #allocation1 [shape = 'u32[144,128]{1,0:T(1,128)}', space=vmem, size = 0x12000, scoped, tag = 'internal scratch']
  %s0 = inlined_call_operand.hbm [shape: f32[2,4,256], index: 0, kind: input, shape index: {}]
  %s1 = inlined_call_operand.vmem [shape: s32[2,1,256], index: 1, kind: input, shape index: {}]
  %s2 = inlined_call_operand.vmem [shape: f32[4,1], index: 2, kind: input, shape index: {}]
  %s3 = inlined_call_operand.hbm [shape: f32[2,1,128], index: 3, kind: output, shape index: {0}]
  %s4 = inlined_call_operand.hbm [shape: f32[2,1,128], index: 4, kind: output, shape index: {1}]
  %5 = xla_tuple %s3, %s4
  %s6 = sld [smem:[#allocation0]]
  $region34: #{tpu_custom_call.1} parent=0
    _
  %s8 = ssub.s32 1, %s6
  %s9 = scalar_select 0, %s8, %s6
  $region1: #{tpu_custom_call.1} parent=0
    #allocation2 [shape = 'u8[8192]{0}', space=vmem, size = 0x2000, scoped, tag = 'input window, operand 0, single buffered']
    #allocation3 [shape = 's32[1]{0}', space=sflag, size = 0x4, scoped, tag = 'scoped memory for tpu_custom_call.1']
    #allocation4 [shape = 's32[1]{0}', space=sflag, size = 0x4, scoped, tag = 'scoped memory for tpu_custom_call.1']
    #allocation5 [shape = 'u8[1024]{0}', space=vmem, size = 0x400, scoped, tag = 'output window, operand 0, single buffered']
    #allocation6 [shape = 'u8[1024]{0}', space=vmem, size = 0x400, scoped, tag = 'output window, operand 1, single buffered']
    #allocation7 [shape = 's32[1]{0}', space=sflag, size = 0x4, scoped, tag = 'scoped memory for tpu_custom_call.1']
    %10 = vsyncpa [#allocation3], 0
    %11 = vsyncpa [#allocation4], 0
    %12 = vsyncpa [#allocation7], 0
    // Predicated region
    $region2: #{tpu_custom_call.1} parent=1 // pred_check
      _
    $region3: #{tpu_custom_call.1} parent=1 // pred_check_branch
      %14 = sbr.rel (0) target = $region5
    $region4: #{tpu_custom_call.1} parent=1 // pred_region
      %s16 = ssub.s32 256, 256
      %17 = vsyncadd [#allocation3], %s16
      %s18 = sshll.u32 [#allocation2], 4
      %s19 = int_to_ptr.vmem [resolvable:$true] %s18
      %24 = dma.hbm_to_vmem [thread:$0]  %s0, 256, %s19, [#allocation3], 128, 128, 8
    $region5: #{tpu_custom_call.1} parent=1 // pred_fallthru
      _
    // Predicated region
    $region6: #{tpu_custom_call.1} parent=1 // pred_check
      _
    $region7: #{tpu_custom_call.1} parent=1 // pred_check_branch
      %26 = sbr.rel (0) target = $region9
    $region8: #{tpu_custom_call.1} parent=1 // pred_region
      _
    $region9: #{tpu_custom_call.1} parent=1 // pred_fallthru
      _
    // Predicated region
    $region10: #{tpu_custom_call.1} parent=1 // pred_check
      _
    $region11: #{tpu_custom_call.1} parent=1 // pred_check_branch
      %28 = sbr.rel (0) target = $region13
    $region12: #{tpu_custom_call.1} parent=1 // pred_region
      _
    $region13: #{tpu_custom_call.1} parent=1 // pred_fallthru
      _
    // Predicated region
    $region14: #{tpu_custom_call.1} parent=1 // pred_check
      _
    $region15: #{tpu_custom_call.1} parent=1 // pred_check_branch
      %30 = sbr.rel (0) target = $region17
    $region16: #{tpu_custom_call.1} parent=1 // pred_region
      %31 = dma.done [#allocation3], 256
    $region17: #{tpu_custom_call.1} parent=1 // pred_fallthru
      _
    %v32 = vld [vmem:[#allocation2] sm:$0xff]
    %v33 = vld [vmem:[#allocation2 + $0x8] sm:$0xff]
    %v34 = vld [vmem:[%s1] sm:$0x3]
    %v35 = vld [vmem:[%s1 + $0x2] sm:$0x3]
    %v38 = vcombine.high %v32, %v32
    %v39 = vcombine.high %v33, %v33
    %vm42 = vcmask 1043456
    %v43 = vsel %vm42, %v32, -inf
    %v44 = vrot.slane %v43, 4
    %v45 = vmax.f32 %v43, %v44
    %v46 = vrot.slane %v45, 2
    %v47 = vmax.f32 %v45, %v46
    %v48 = vrot.slane %v47, 1
    %v49 = vmax.f32 %v47, %v48
    %v50 = vsel %vm42, %v38, -inf
    %v51 = vrot.slane %v50, 4
    %v52 = vmax.f32 %v50, %v51
    %v53 = vrot.slane %v52, 2
    %v54 = vmax.f32 %v52, %v53
    %v55 = vrot.slane %v54, 1
    %v56 = vmax.f32 %v54, %v55
    %v57 = vsel %vm42, %v33, -inf
    %v58 = vrot.slane %v57, 4
    %v59 = vmax.f32 %v57, %v58
    %v60 = vrot.slane %v59, 2
    %v61 = vmax.f32 %v59, %v60
    %v62 = vrot.slane %v61, 1
    %v63 = vmax.f32 %v61, %v62
    %v64 = vsel %vm42, %v39, -inf
    %v65 = vrot.slane %v64, 4
    %v66 = vmax.f32 %v64, %v65
    %v67 = vrot.slane %v66, 2
    %v68 = vmax.f32 %v66, %v67
    %v69 = vrot.slane %v68, 1
    %v70 = vmax.f32 %v68, %v69
    %v75 = vcombine.low %v49, %v56
    %v76 = vcombine.low %v63, %v70
    %v79 = vsub.f32 %v32, %v75
    %v80 = vsub.f32 %v33, %v76
    %v81 = vmul.f32 %v79, 1.442695
    %v82 = vpow.pop %v81
    %v83 = vmul.f32 %v80, 1.442695
    %v84 = vpow.pop %v83
    %v87 = vcombine.high %v82, %v82
    %v88 = vcombine.high %v84, %v84
    %v91 = vsel %vm42, %v82, 0.0
    %v92 = vrot.slane %v91, 4
    %v93 = vadd.f32 %v91, %v92
    %v94 = vrot.slane %v93, 2
    %v95 = vadd.f32 %v93, %v94
    %v96 = vrot.slane %v95, 1
    %v97 = vadd.f32 %v95, %v96
    %v98 = vsel %vm42, %v87, 0.0
    %v99 = vrot.slane %v98, 4
    %v100 = vadd.f32 %v98, %v99
    %v101 = vrot.slane %v100, 2
    %v102 = vadd.f32 %v100, %v101
    %v103 = vrot.slane %v102, 1
    %v104 = vadd.f32 %v102, %v103
    %v105 = vsel %vm42, %v84, 0.0
    %v106 = vrot.slane %v105, 4
    %v107 = vadd.f32 %v105, %v106
    %v108 = vrot.slane %v107, 2
    %v109 = vadd.f32 %v107, %v108
    %v110 = vrot.slane %v109, 1
    %v111 = vadd.f32 %v109, %v110
    %v112 = vsel %vm42, %v88, 0.0
    %v113 = vrot.slane %v112, 4
    %v114 = vadd.f32 %v112, %v113
    %v115 = vrot.slane %v114, 2
    %v116 = vadd.f32 %v114, %v115
    %v117 = vrot.slane %v116, 1
    %v118 = vadd.f32 %v116, %v117
    %v119 = vlaneseq
    %v120 = vshrl.u32 %v119, 7
    %v121 = vlaneseq
    %v122 = vshrl.u32 %v121, 7
    %v123 = vsub.s32 0, %v122
    %v124 = vrot.slane %v34, %v123
    %v125 = vlaneseq
    %v126 = vshrl.u32 %v125, 7
    %v127 = vsub.s32 1, %v126
    %v128 = vrot.slane %v34, %v127
    %v129 = vlaneseq
    %v130 = vshrl.u32 %v129, 7
    %v131 = vsub.s32 0, %v130
    %v132 = vrot.slane %v35, %v131
    %v133 = vlaneseq
    %v134 = vshrl.u32 %v133, 7
    %v135 = vsub.s32 1, %v134
    %v136 = vrot.slane %v35, %v135
    %vm137 = vcmp.eq.s32.totalorder %v120, %v124
    %vm138 = vcmp.eq.s32.totalorder %v120, %v128
    %vm139 = vcmp.eq.s32.totalorder %v120, %v132
    %vm140 = vcmp.eq.s32.totalorder %v120, %v136
    %v143 = vcombine.high %v79, %v79
    %v144 = vcombine.high %v80, %v80
    %v147 = vsel %vm137, %v79, 0.0
    %v148 = vsel %vm138, %v143, 0.0
    %v149 = vsel %vm139, %v80, 0.0
    %v150 = vsel %vm140, %v144, 0.0
    %v151 = vsel %vm42, %v147, 0.0
    %v152 = vrot.slane %v151, 4
    %v153 = vadd.f32 %v151, %v152
    %v154 = vrot.slane %v153, 2
    %v155 = vadd.f32 %v153, %v154
    %v156 = vrot.slane %v155, 1
    %v157 = vadd.f32 %v155, %v156
    %v158 = vsel %vm42, %v148, 0.0
    %v159 = vrot.slane %v158, 4
    %v160 = vadd.f32 %v158, %v159
    %v161 = vrot.slane %v160, 2
    %v162 = vadd.f32 %v160, %v161
    %v163 = vrot.slane %v162, 1
    %v164 = vadd.f32 %v162, %v163
    %v165 = vsel %vm42, %v149, 0.0
    %v166 = vrot.slane %v165, 4
    %v167 = vadd.f32 %v165, %v166
    %v168 = vrot.slane %v167, 2
    %v169 = vadd.f32 %v167, %v168
    %v170 = vrot.slane %v169, 1
    %v171 = vadd.f32 %v169, %v170
    %v172 = vsel %vm42, %v150, 0.0
    %v173 = vrot.slane %v172, 4
    %v174 = vadd.f32 %v172, %v173
    %v175 = vrot.slane %v174, 2
    %v176 = vadd.f32 %v174, %v175
    %v177 = vrot.slane %v176, 1
    %v178 = vadd.f32 %v176, %v177
    %v179 = vsel %vm137, %v82, 0.0
    %v180 = vsel %vm138, %v87, 0.0
    %v181 = vsel %vm139, %v84, 0.0
    %v182 = vsel %vm140, %v88, 0.0
    %v183 = vsel %vm42, %v179, 0.0
    %v184 = vrot.slane %v183, 4
    %v185 = vadd.f32 %v183, %v184
    %v186 = vrot.slane %v185, 2
    %v187 = vadd.f32 %v185, %v186
    %v188 = vrot.slane %v187, 1
    %v189 = vadd.f32 %v187, %v188
    %v190 = vsel %vm42, %v180, 0.0
    %v191 = vrot.slane %v190, 4
    %v192 = vadd.f32 %v190, %v191
    %v193 = vrot.slane %v192, 2
    %v194 = vadd.f32 %v192, %v193
    %v195 = vrot.slane %v194, 1
    %v196 = vadd.f32 %v194, %v195
    %v197 = vsel %vm42, %v181, 0.0
    %v198 = vrot.slane %v197, 4
    %v199 = vadd.f32 %v197, %v198
    %v200 = vrot.slane %v199, 2
    %v201 = vadd.f32 %v199, %v200
    %v202 = vrot.slane %v201, 1
    %v203 = vadd.f32 %v201, %v202
    %v204 = vsel %vm42, %v182, 0.0
    %v205 = vrot.slane %v204, 4
    %v206 = vadd.f32 %v204, %v205
    %v207 = vrot.slane %v206, 2
    %v208 = vadd.f32 %v206, %v207
    %v209 = vrot.slane %v208, 1
    %v210 = vadd.f32 %v208, %v209
    %v211 = vlog2.pop %v97
    %v212 = vmul.f32 %v211, 0.6931472
    %v213 = vlog2.pop %v104
    %v214 = vmul.f32 %v213, 0.6931472
    %v215 = vlog2.pop %v111
    %v216 = vmul.f32 %v215, 0.6931472
    %v217 = vlog2.pop %v118
    %v218 = vmul.f32 %v217, 0.6931472
    %v219 = vsub.f32 %v157, %v212
    %v220 = vsub.f32 %v164, %v214
    %v221 = vsub.f32 %v171, %v216
    %v222 = vsub.f32 %v178, %v218
    %v223 = vrcp.pop %v97
    %v224 = vrcp.pop %v104
    %v225 = vrcp.pop %v111
    %v226 = vrcp.pop %v118
    %v227 = vmul.f32 %v189, %v223
    %v228 = vmul.f32 %v196, %v224
    %v229 = vmul.f32 %v203, %v225
    %v230 = vmul.f32 %v210, %v226
    %vm231 = vcmp.ne.s32.totalorder %v34, 4294967196
    %vm232 = vcmp.ne.s32.totalorder %v35, 4294967196
    %v233 = vld [vmem:[%s2] sm:$0xf]
    %235 = vset.pattern.permute.xlu0 0
    %236 = vperm.xlu0 %235, %v233
    %v237 = vpop.permute.xlu0 %236
    %v239 = vsel %vm137, %v237, 0.0
    %v240 = vsel %vm138, %v237, 0.0
    %v241 = vsel %vm139, %v237, 0.0
    %v242 = vsel %vm140, %v237, 0.0
    %v243 = vsel %vm42, %v239, 0.0
    %v244 = vrot.slane %v243, 4
    %v245 = vadd.f32 %v243, %v244
    %v246 = vrot.slane %v245, 2
    %v247 = vadd.f32 %v245, %v246
    %v248 = vrot.slane %v247, 1
    %v249 = vadd.f32 %v247, %v248
    %v250 = vsel %vm42, %v240, 0.0
    %v251 = vrot.slane %v250, 4
    %v252 = vadd.f32 %v250, %v251
    %v253 = vrot.slane %v252, 2
    %v254 = vadd.f32 %v252, %v253
    %v255 = vrot.slane %v254, 1
    %v256 = vadd.f32 %v254, %v255
    %v257 = vsel %vm42, %v241, 0.0
    %v258 = vrot.slane %v257, 4
    %v259 = vadd.f32 %v257, %v258
    %v260 = vrot.slane %v259, 2
    %v261 = vadd.f32 %v259, %v260
    %v262 = vrot.slane %v261, 1
    %v263 = vadd.f32 %v261, %v262
    %v264 = vsel %vm42, %v242, 0.0
    %v265 = vrot.slane %v264, 4
    %v266 = vadd.f32 %v264, %v265
    %v267 = vrot.slane %v266, 2
    %v268 = vadd.f32 %v266, %v267
    %v269 = vrot.slane %v268, 1
    %v270 = vadd.f32 %v268, %v269
    %v271 = vsub.f32 0.0, %v249
    %v272 = vsub.f32 0.0, %v256
    %v273 = vsub.f32 0.0, %v263
    %v274 = vsub.f32 0.0, %v270
    %v275 = vmul.f32 %v271, %v219
    %v276 = vmul.f32 %v272, %v220
    %v277 = vmul.f32 %v273, %v221
    %v278 = vmul.f32 %v274, %v222
    %v279 = vsub.f32 1.0, %v227
    %v280 = vsub.f32 1.0, %v228
    %v281 = vsub.f32 1.0, %v229
    %v282 = vsub.f32 1.0, %v230
    %v283 = vmax.f32 %v279, 0.0
    %v284 = vmax.f32 %v280, 0.0
    %v285 = vmax.f32 %v281, 0.0
    %v286 = vmax.f32 %v282, 0.0
    %v287 = vmul.f32 %v283, %v283
    %v288 = vmul.f32 %v284, %v284
    %v289 = vmul.f32 %v285, %v285
    %v290 = vmul.f32 %v286, %v286
    %v291 = vmul.f32 %v287, %v275
    %v292 = vmul.f32 %v288, %v276
    %v293 = vmul.f32 %v289, %v277
    %v294 = vmul.f32 %v290, %v278
    %v299 = vcombine.low %v291, %v292
    %v301 = vunpack.c.l.s4 1966171168
    %v302 = vunpack.c.0.s8 %v301
    %v303 = vlaneseq
    %v304 = vshrl.u32 %v303, 7
    %v305 = vsub.s32 %v302, %v304
    %v306 = vrot.slane %v299, %v305
    %v308 = vunpack.c.l.s4 1966171168
    %v309 = vunpack.c.0.s8 %v308
    %v310 = vlaneseq
    %v311 = vshrl.u32 %v310, 7
    %v312 = vsub.s32 %v309, %v311
    %v313 = vrot.slane %v306, %v312
    %v314 = vcombine.low %v293, %v294
    %v316 = vunpack.c.l.s4 1966171168
    %v317 = vunpack.c.0.s8 %v316
    %v318 = vlaneseq
    %v319 = vshrl.u32 %v318, 7
    %v320 = vsub.s32 %v317, %v319
    %v321 = vrot.slane %v314, %v320
    %v323 = vunpack.c.l.s4 1966171168
    %v324 = vunpack.c.0.s8 %v323
    %v325 = vlaneseq
    %v326 = vshrl.u32 %v325, 7
    %v327 = vsub.s32 %v324, %v326
    %v328 = vrot.slane %v321, %v327
    %v331 = vsel %vm231, %v313, 0.0
    %v332 = vsel %vm232, %v328, 0.0
    %v333 = vsel %vm231, 1, 0
    %v334 = vsel %vm232, 1, 0
    %v335 = vcvt.s32.f32 %v333
    %v336 = vcvt.s32.f32 %v334
    %v339 = vrot.slane %v331, 1
    %v340 = vrot.slane %v332, 1
    %v343 = vadd.f32 %v331, %v339
    %v344 = vadd.f32 %v332, %v340
    %v347 = vrot.slane %v335, 1
    %v348 = vrot.slane %v336, 1
    %v351 = vadd.f32 %v335, %v347
    %v352 = vadd.f32 %v336, %v348
    %353 = vst [vmem:[#allocation5] sm:$0x1] %v343
    %354 = vst [vmem:[#allocation5 + $0x1] sm:$0x1] %v344
    %355 = vst [vmem:[#allocation6] sm:$0x1] %v351
    %356 = vst [vmem:[#allocation6 + $0x1] sm:$0x1] %v352
    // Predicated region
    $region18: #{tpu_custom_call.1} parent=1 // pred_check
      _
    $region19: #{tpu_custom_call.1} parent=1 // pred_check_branch
      %358 = sbr.rel (0) target = $region21
    $region20: #{tpu_custom_call.1} parent=1 // pred_region
      %s360 = ssub.s32 32, 32
      %361 = vsyncadd [#allocation4], %s360
      %s362 = sshll.u32 [#allocation5], 4
      %s363 = int_to_ptr.vmem [resolvable:$true] %s362
      %368 = dma.vmem_to_hbm [thread:$0]  %s363, 32, %s3, [#allocation4], 16, 16, 1
    $region21: #{tpu_custom_call.1} parent=1 // pred_fallthru
      _
    // Predicated region
    $region22: #{tpu_custom_call.1} parent=1 // pred_check
      _
    $region23: #{tpu_custom_call.1} parent=1 // pred_check_branch
      %370 = sbr.rel (0) target = $region25
    $region24: #{tpu_custom_call.1} parent=1 // pred_region
      %s372 = ssub.s32 32, 32
      %373 = vsyncadd [#allocation7], %s372
      %s374 = sshll.u32 [#allocation6], 4
      %s375 = int_to_ptr.vmem [resolvable:$true] %s374
      %380 = dma.vmem_to_hbm [thread:$0]  %s375, 32, %s4, [#allocation7], 16, 16, 1
    $region25: #{tpu_custom_call.1} parent=1 // pred_fallthru
      _
    // Predicated region
    $region26: #{tpu_custom_call.1} parent=1 // pred_check
      _
    $region27: #{tpu_custom_call.1} parent=1 // pred_check_branch
      %382 = sbr.rel (0) target = $region29
    $region28: #{tpu_custom_call.1} parent=1 // pred_region
      %383 = dma.done [#allocation4], 32
    $region29: #{tpu_custom_call.1} parent=1 // pred_fallthru
      _
    // Predicated region
    $region30: #{tpu_custom_call.1} parent=1 // pred_check
      _
    $region31: #{tpu_custom_call.1} parent=1 // pred_check_branch
      %385 = sbr.rel (0) target = $region33
    $region32: #{tpu_custom_call.1} parent=1 // pred_region
      %386 = dma.done [#allocation7], 32
    $region33: #{tpu_custom_call.1} parent=1 // pred_fallthru
      _
    %387 = vsyncpa [#allocation3], 1
    %388 = vsyncpa [#allocation4], 1
    %389 = vsyncpa [#allocation7], 1

</llo_original>
